<compile_context>
chip_gen: v5e
topology: v5e:2x2
jax: 0.10.0
libtpu: 0.0.40
codegen_flags: <defaults>
</compile_context>

<pallas_src>
import functools

import jax
import jax.numpy as jnp
from jax.experimental import pallas as pl
from jax.experimental.pallas import tpu as pltpu


def _cdiv(a: int, b: int) -> int:
    return -(-a // b)


def _batch_nll_kernel(inp_ref, tgt_ref, w_ref, out_ref, num_acc, den_acc, *,
                      ignore_index: int, n_rows: int, has_weight: bool,
                      mask_rows: bool, mean: bool):
    # inp_ref: (TB, TN, C) log-probs (native dtype)    tgt_ref: (TB, TN, 1) int32
    # w_ref:   (1, C) f32                              out_ref: (TB, 1, 1) f32
    # num_acc/den_acc: (TB, 1, 1) f32 VMEM scratch accumulators (resident across the N axis)
    n_idx = pl.program_id(1)

    @pl.when(n_idx == 0)
    def _init():
        num_acc[...] = jnp.zeros_like(num_acc)
        if mean:
            den_acc[...] = jnp.zeros_like(den_acc)

    x = inp_ref[...].astype(jnp.float32)          # per-tile upcast (no wrapper-level f32 copy)
    t = tgt_ref[...]                              # (TB, TN, 1) int32
    tb, tn, c = x.shape

    valid = t != ignore_index                     # (TB, TN, 1)
    if mask_rows:
        # last N-tile overhangs the array: mask out rows >= N (their VMEM contents are garbage)
        rows = n_idx * tn + jax.lax.broadcasted_iota(jnp.int32, (tb, tn, 1), 1)
        valid = valid & (rows < n_rows)

    classes = jax.lax.broadcasted_iota(jnp.int32, (tb, tn, c), 2)   # lane iota
    sel = (classes == t) & valid                  # (TB, TN, C) one-hot gather mask (valid rows only)
    xm = jnp.where(sel, x, 0.0)                   # mask BEFORE product: avoids 0 * (-inf) = NaN

    if has_weight:
        w3 = w_ref[...].astype(jnp.float32).reshape(1, 1, c)
        wm = jnp.where(sel, w3, 0.0)
        num_acc[...] += jnp.sum(wm * xm, axis=(1, 2), keepdims=True)
        if mean:
            den_acc[...] += jnp.sum(wm, axis=(1, 2), keepdims=True)
    else:
        # unweighted fast path: denominator is just the count of valid rows
        num_acc[...] += jnp.sum(xm, axis=(1, 2), keepdims=True)
        if mean:
            den_acc[...] += jnp.sum(valid.astype(jnp.float32), axis=(1, 2), keepdims=True)

    @pl.when(n_idx == pl.num_programs(1) - 1)
    def _finalize():
        if mean:
            # exact division; runs once per batch block so cost is negligible
            out_ref[...] = -(num_acc[...] / den_acc[...])
        else:
            out_ref[...] = -num_acc[...]


def batch_nll_loss(inputs, targets, weight=None, ignore_index: int = -100,
                   reduction: str = "mean", block_bytes: int = 2 * 1024 * 1024):
    """Equivalent of BatchNLLLoss(weight, ignore_index, reduction)(inputs, targets)."""
    if reduction not in ("mean", "sum"):
        raise ValueError(f"Unsupported reduction mode: {reduction}")
    B, N, C = inputs.shape
    itemsize = jnp.dtype(inputs.dtype).itemsize

    # VMEM cost per row of a tile: one row of log-probs + the int32 target column,
    # whose trailing dim of 1 is lane-padded to 128 in VMEM.
    row_bytes = C * itemsize + 128 * 4
    rows = max(1, block_bytes // row_bytes)

    if rows >= N:
        # small per-batch problems: fuse whole sequences, several batch elements per step
        tn = N
        tb = max(1, min(B, rows // N))
        if B > 1:
            tb = min(tb, _cdiv(B, 2))   # keep >=2 steps on the parallel axis (v7x: 2 TCs)
    else:
        # large per-batch problems: stream N with an accumulator
        tb = 1
        tn = max(8, (rows // 8) * 8)            # sublane-aligned N tile
        tn = min(tn, _cdiv(N, 8) * 8)

    grid = (_cdiv(B, tb), _cdiv(N, tn))
    mask_rows = (N % tn) != 0

    has_weight = weight is not None
    if has_weight:
        w2 = jnp.asarray(weight, jnp.float32).reshape(1, C)
    else:
        w2 = jnp.ones((1, C), jnp.float32)      # passed but unread on the fast path
    t3 = targets.astype(jnp.int32).reshape(B, N, 1)

    kernel = functools.partial(
        _batch_nll_kernel, ignore_index=ignore_index, n_rows=N,
        has_weight=has_weight, mask_rows=mask_rows, mean=(reduction == "mean"))

    # VMEM budget: double-buffered input + (lane-padded) target blocks, plus headroom for the
    # f32 upcast/intermediate tiles. Capped at 48 MiB so it also fits v7x's 64 MiB VMEM.
    in_blk = tb * tn * C * itemsize
    tgt_blk = tb * tn * 128 * 4
    est = 2 * (in_blk + tgt_blk) + 4 * tb * tn * C * 4 + (2 << 20)
    vmem_limit = int(min(max(est, 32 << 20), 48 << 20))

    cost = pl.CostEstimate(
        flops=8 * B * N * C,
        transcendentals=0,
        bytes_accessed=B * N * C * itemsize + B * N * 4 + C * 4 + B * 4)

    out = pl.pallas_call(
        kernel,
        out_shape=jax.ShapeDtypeStruct((B, 1, 1), jnp.float32),
        grid_spec=pltpu.PrefetchScalarGridSpec(
            num_scalar_prefetch=0,
            grid=grid,
            in_specs=[
                pl.BlockSpec((tb, tn, C), lambda b, n: (b, n, 0)),
                pl.BlockSpec((tb, tn, 1), lambda b, n: (b, n, 0)),
                pl.BlockSpec((1, C), lambda b, n: (0, 0)),
            ],
            # output block index is constant across the N axis -> stays resident,
            # written back once per batch block
            out_specs=pl.BlockSpec((tb, 1, 1), lambda b, n: (b, 0, 0)),
            scratch_shapes=[pltpu.VMEM((tb, 1, 1), jnp.float32),
                            pltpu.VMEM((tb, 1, 1), jnp.float32)],
        ),
        compiler_params=pltpu.CompilerParams(
            dimension_semantics=("parallel", "arbitrary"),
            vmem_limit_bytes=vmem_limit),
        cost_estimate=cost,
    )(inputs, t3, w2)
    return out.reshape(B)


if __name__ == "__main__":
    key = jax.random.PRNGKey(0)
    B, N, C = 2, 8, 32
    ignore_index = -100

    k1, k2 = jax.random.split(key)
    logits = jax.random.normal(k1, (B, N, C), dtype=jnp.float32)
    logprobs = jax.nn.log_softmax(logits, axis=-1)            # nll_loss expects log-probs
    targets = jax.random.randint(k2, (B, N), 0, C, dtype=jnp.int32)
    targets = targets.at[0, 3].set(ignore_index).at[1, 0].set(ignore_index)

    weight = 0.5 + jnp.arange(C, dtype=jnp.float32) / C

    # pure-JAX reference (same semantics as torch.vmap(F.nll_loss))
    def ref_loss(lp, t, w, reduction="mean"):
        valid = t != ignore_index
        t_safe = jnp.where(valid, t, 0)
        w_full = jnp.ones((lp.shape[-1],), jnp.float32) if w is None else w
        w_t = jnp.where(valid, w_full[t_safe], 0.0)
        lp_t = jnp.take_along_axis(lp.astype(jnp.float32), t_safe[:, None], axis=1)[:, 0]
        num = -jnp.sum(w_t * lp_t)
        return num / jnp.sum(w_t) if reduction == "mean" else num

    # 1) weighted, f32 input, reduction='mean' (module default)
    out_w = jax.block_until_ready(
        batch_nll_loss(logprobs, targets, weight=weight, ignore_index=ignore_index))
    ref_w = jax.vmap(lambda lp, t: ref_loss(lp, t, weight))(logprobs, targets)
    assert out_w.shape == (B,)
    assert jnp.allclose(out_w, ref_w, rtol=1e-5, atol=1e-6), (out_w, ref_w)

    # 2) unweighted fast path, bf16 input (native-dtype streaming + in-kernel upcast)
    lp_bf16 = logprobs.astype(jnp.bfloat16)
    out_u = jax.block_until_ready(
        batch_nll_loss(lp_bf16, targets, ignore_index=ignore_index))
    ref_u = jax.vmap(lambda lp, t: ref_loss(lp, t, None))(lp_bf16, targets)
    assert jnp.allclose(out_u, ref_u, rtol=1e-2, atol=1e-3), (out_u, ref_u)

    # 3) weighted, reduction='sum'
    out_s = jax.block_until_ready(
        batch_nll_loss(logprobs, targets, weight=weight, ignore_index=ignore_index,
                       reduction="sum"))
    ref_s = jax.vmap(lambda lp, t: ref_loss(lp, t, weight, "sum"))(logprobs, targets)
    assert jnp.allclose(out_s, ref_s, rtol=1e-5, atol=1e-5), (out_s, ref_s)

    # 4) streamed-N path with ragged last tile (forces tb=1, tn=8, grid N-axis > 1, row masking)
    N2 = 20
    k3, k4 = jax.random.split(k1)
    lp2 = jax.nn.log_softmax(jax.random.normal(k3, (B, N2, C), dtype=jnp.float32), axis=-1)
    tg2 = jax.random.randint(k4, (B, N2), 0, C, dtype=jnp.int32)
    tg2 = tg2.at[0, 5].set(ignore_index)
    out_r = jax.block_until_ready(
        batch_nll_loss(lp2, tg2, weight=weight, ignore_index=ignore_index,
                       block_bytes=4096))
    ref_r = jax.vmap(lambda lp, t: ref_loss(lp, t, weight))(lp2, tg2)
    assert jnp.allclose(out_r, ref_r, rtol=1e-5, atol=1e-6), (out_r, ref_r)

    print("KERNEL_OK")
</pallas_src>

<mosaic_0001>
module attributes {stable_mosaic.version = 11 : i64} {
  func.func @_batch_nll_kernel(%arg0: i32, %arg1: i32, %arg2: memref<1x8x32xf32, #tpu.memory_space<vmem>>, %arg3: memref<1x8x1xi32, #tpu.memory_space<vmem>>, %arg4: memref<1x32xf32, #tpu.memory_space<vmem>>, %arg5: memref<1x1x1xf32, #tpu.memory_space<vmem>>, %arg6: memref<1x1x1xf32, #tpu.memory_space<vmem>>, %arg7: memref<1x1x1xf32, #tpu.memory_space<vmem>>) attributes {dimension_semantics = [#tpu.dimension_semantics<parallel>, #tpu.dimension_semantics<arbitrary>], iteration_bounds = array<i64: 2, 1>, scalar_prefetch = 0 : i64, scratch_operands = 2 : i64, tpu.core_type = #tpu.core_type<tc>, window_params = [{transform_indices = @transform_0, window_bounds = array<i64: 1, 8, 32>}, {transform_indices = @transform_1, window_bounds = array<i64: 1, 8, 1>}, {pipeline_mode = #tpu.pipeline_mode<synchronous>, transform_indices = @transform_2, window_bounds = array<i64: 1, 32>}, {transform_indices = @transform_3, window_bounds = array<i64: 1, 1, 1>}]} {
    %c0_i32 = arith.constant 0 : i32
    %0 = arith.cmpi eq, %arg1, %c0_i32 : i32
    %1 = arith.extui %0 : i1 to i32
    %c0_i32_0 = arith.constant 0 : i32
    %2 = arith.cmpi ne, %1, %c0_i32_0 : i32
    scf.if %2 {
      %cst_25 = arith.constant 0.000000e+00 : f32
      %34 = vector.broadcast %cst_25 : f32 to vector<1x1x1xf32>
      %c0_26 = arith.constant 0 : index
      %c0_27 = arith.constant 0 : index
      %c0_28 = arith.constant 0 : index
      %35 = vector.load %arg6[%c0_26, %c0_27, %c0_28] : memref<1x1x1xf32, #tpu.memory_space<vmem>>, vector<1x1x1xf32>
      tpu.vector_store %arg6[%c0_26, %c0_27, %c0_28], %34 {strides = array<i32>} : memref<1x1x1xf32, #tpu.memory_space<vmem>>, vector<1x1x1xf32>,
      %cst_29 = arith.constant 0.000000e+00 : f32
      %36 = vector.broadcast %cst_29 : f32 to vector<1x1x1xf32>
      %c0_30 = arith.constant 0 : index
      %c0_31 = arith.constant 0 : index
      %c0_32 = arith.constant 0 : index
      %37 = vector.load %arg7[%c0_30, %c0_31, %c0_32] : memref<1x1x1xf32, #tpu.memory_space<vmem>>, vector<1x1x1xf32>
      tpu.vector_store %arg7[%c0_30, %c0_31, %c0_32], %36 {strides = array<i32>} : memref<1x1x1xf32, #tpu.memory_space<vmem>>, vector<1x1x1xf32>,
    } else {
    }
    %c0 = arith.constant 0 : index
    %c0_1 = arith.constant 0 : index
    %c0_2 = arith.constant 0 : index
    %3 = vector.load %arg2[%c0, %c0_1, %c0_2] : memref<1x8x32xf32, #tpu.memory_space<vmem>>, vector<1x8x32xf32>
    %c0_3 = arith.constant 0 : index
    %c0_4 = arith.constant 0 : index
    %c0_5 = arith.constant 0 : index
    %4 = vector.load %arg3[%c0_3, %c0_4, %c0_5] : memref<1x8x1xi32, #tpu.memory_space<vmem>>, vector<1x8x1xi32>
    %c-100_i32 = arith.constant -100 : i32
    %5 = vector.broadcast %c-100_i32 : i32 to vector<1x8x1xi32>
    %6 = arith.cmpi ne, %4, %5 : vector<1x8x1xi32>
    %7 = tpu.iota {dimensions = array<i32: 2>} : vector<1x8x32xi32>
    %8 = vector.broadcast %4 : vector<1x8x1xi32> to vector<1x8x32xi32>
    %9 = arith.cmpi eq, %7, %8 : vector<1x8x32xi32>
    %10 = vector.broadcast %6 : vector<1x8x1xi1> to vector<1x8x32xi1>
    %11 = arith.andi %9, %10 : vector<1x8x32xi1>
    %cst = arith.constant 0.000000e+00 : f32
    %12 = vector.broadcast %cst : f32 to vector<1x8x32xf32>
    %13 = arith.select %11, %3, %12 : vector<1x8x32xi1>, vector<1x8x32xf32>
    %c0_6 = arith.constant 0 : index
    %c0_7 = arith.constant 0 : index
    %14 = vector.load %arg4[%c0_6, %c0_7] : memref<1x32xf32, #tpu.memory_space<vmem>>, vector<1x32xf32>
    %15 = vector.shape_cast %14 : vector<1x32xf32> to vector<1x1x32xf32>
    %cst_8 = arith.constant 0.000000e+00 : f32
    %16 = vector.shape_cast %15 : vector<1x1x32xf32> to vector<1x1x32xf32>
    %17 = vector.broadcast %16 : vector<1x1x32xf32> to vector<1x8x32xf32>
    %18 = vector.broadcast %cst_8 : f32 to vector<1x8x32xf32>
    %19 = arith.select %11, %17, %18 : vector<1x8x32xi1>, vector<1x8x32xf32>
    %c0_9 = arith.constant 0 : index
    %c0_10 = arith.constant 0 : index
    %c0_11 = arith.constant 0 : index
    %20 = vector.load %arg6[%c0_9, %c0_10, %c0_11] : memref<1x1x1xf32, #tpu.memory_space<vmem>>, vector<1x1x1xf32>
    %21 = arith.mulf %19, %13 : vector<1x8x32xf32>
    %cst_12 = arith.constant dense<0.000000e+00> : vector<1xf32>
    %22 = vector.multi_reduction <add>, %21, %cst_12 [1, 2] : vector<1x8x32xf32> to vector<1xf32>
    %23 = vector.shape_cast %22 : vector<1xf32> to vector<1x1x1xf32>
    %24 = arith.addf %20, %23 : vector<1x1x1xf32>
    %c0_13 = arith.constant 0 : index
    %c0_14 = arith.constant 0 : index
    %c0_15 = arith.constant 0 : index
    %25 = vector.load %arg6[%c0_13, %c0_14, %c0_15] : memref<1x1x1xf32, #tpu.memory_space<vmem>>, vector<1x1x1xf32>
    tpu.vector_store %arg6[%c0_13, %c0_14, %c0_15], %24 {strides = array<i32>} : memref<1x1x1xf32, #tpu.memory_space<vmem>>, vector<1x1x1xf32>,
    %c0_16 = arith.constant 0 : index
    %c0_17 = arith.constant 0 : index
    %c0_18 = arith.constant 0 : index
    %26 = vector.load %arg7[%c0_16, %c0_17, %c0_18] : memref<1x1x1xf32, #tpu.memory_space<vmem>>, vector<1x1x1xf32>
    %cst_19 = arith.constant dense<0.000000e+00> : vector<1xf32>
    %27 = vector.multi_reduction <add>, %19, %cst_19 [1, 2] : vector<1x8x32xf32> to vector<1xf32>
    %28 = vector.shape_cast %27 : vector<1xf32> to vector<1x1x1xf32>
    %29 = arith.addf %26, %28 : vector<1x1x1xf32>
    %c0_20 = arith.constant 0 : index
    %c0_21 = arith.constant 0 : index
    %c0_22 = arith.constant 0 : index
    %30 = vector.load %arg7[%c0_20, %c0_21, %c0_22] : memref<1x1x1xf32, #tpu.memory_space<vmem>>, vector<1x1x1xf32>
    tpu.vector_store %arg7[%c0_20, %c0_21, %c0_22], %29 {strides = array<i32>} : memref<1x1x1xf32, #tpu.memory_space<vmem>>, vector<1x1x1xf32>,
    %c0_i32_23 = arith.constant 0 : i32
    %31 = arith.cmpi eq, %arg1, %c0_i32_23 : i32
    %32 = arith.extui %31 : i1 to i32
    %c0_i32_24 = arith.constant 0 : i32
    %33 = arith.cmpi ne, %32, %c0_i32_24 : i32
    scf.if %33 {
      %c0_25 = arith.constant 0 : index
      %c0_26 = arith.constant 0 : index
      %c0_27 = arith.constant 0 : index
      %34 = vector.load %arg6[%c0_25, %c0_26, %c0_27] : memref<1x1x1xf32, #tpu.memory_space<vmem>>, vector<1x1x1xf32>
      %c0_28 = arith.constant 0 : index
      %c0_29 = arith.constant 0 : index
      %c0_30 = arith.constant 0 : index
      %35 = vector.load %arg7[%c0_28, %c0_29, %c0_30] : memref<1x1x1xf32, #tpu.memory_space<vmem>>, vector<1x1x1xf32>
      %36 = arith.divf %34, %35 : vector<1x1x1xf32>
      %cst_31 = arith.constant 0.000000e+00 : f32
      %37 = vector.broadcast %cst_31 : f32 to vector<1x1x1xf32>
      %38 = arith.subf %37, %36 : vector<1x1x1xf32>
      %c0_32 = arith.constant 0 : index
      %c0_33 = arith.constant 0 : index
      %c0_34 = arith.constant 0 : index
      %39 = vector.load %arg5[%c0_32, %c0_33, %c0_34] : memref<1x1x1xf32, #tpu.memory_space<vmem>>, vector<1x1x1xf32>
      tpu.vector_store %arg5[%c0_32, %c0_33, %c0_34], %38 {strides = array<i32>} : memref<1x1x1xf32, #tpu.memory_space<vmem>>, vector<1x1x1xf32>,
    } else {
    }
    return
  }
  func.func @transform_0(%arg0: i32, %arg1: i32) -> (i32, i32, i32) {
    %c0_i32 = arith.constant 0 : i32
    %c0_i32_0 = arith.constant 0 : i32
    return %arg0, %arg1, %c0_i32 : i32, i32, i32
  }
  func.func @transform_1(%arg0: i32, %arg1: i32) -> (i32, i32, i32) {
    %c0_i32 = arith.constant 0 : i32
    %c0_i32_0 = arith.constant 0 : i32
    return %arg0, %arg1, %c0_i32 : i32, i32, i32
  }
  func.func @transform_2(%arg0: i32, %arg1: i32) -> (i32, i32) {
    %c0_i32 = arith.constant 0 : i32
    %c0_i32_0 = arith.constant 0 : i32
    %c0_i32_1 = arith.constant 0 : i32
    return %c0_i32, %c0_i32_0 : i32, i32
  }
  func.func @transform_3(%arg0: i32, %arg1: i32) -> (i32, i32, i32) {
    %c0_i32 = arith.constant 0 : i32
    %c0_i32_0 = arith.constant 0 : i32
    %c0_i32_1 = arith.constant 0 : i32
    return %arg0, %c0_i32, %c0_i32_0 : i32, i32, i32
  }
}

</mosaic_0001>

<llo_original>
// kernel: tpu_custom_call.1
$region0: #{tpu_custom_call.1}
  #allocation0 [shape = 'u32[]', space=smem, size = 0x4, offset = 0x4, fixed_abs, tag = 'smem constant byte address 0x4 - core index']
  #allocation1 [shape = 'u32[72,128]{1,0:T(1,128)}', space=vmem, size = 0x9000, scoped, tag = 'internal scratch']
  #allocation2 [shape = 'f32[1,1,1]{2,1,0:T(1,128)}', space=vmem, size = 0x200, scoped, tag = 'scratch operand']
  #allocation3 [shape = 'f32[1,1,1]{2,1,0:T(1,128)}', space=vmem, size = 0x200, scoped, tag = 'scratch operand']
  %s0 = inlined_call_operand.vmem [shape: f32[2,8,32], index: 0, kind: input, shape index: {}]
  %s1 = inlined_call_operand.vmem [shape: s32[2,8,1], index: 1, kind: input, shape index: {}]
  %s2 = inlined_call_operand.vmem [shape: f32[1,32], index: 2, kind: input, shape index: {}]
  %s3 = inlined_call_operand.vmem [shape: f32[2,1,1], index: 3, kind: output, shape index: {}]
  %s4 = sld [smem:[#allocation0]]
  $region53: #{tpu_custom_call.1} parent=0
    _
  %s6 = ssub.s32 1, %s4
  %s7 = scalar_select 0, %s6, %s4
  loop: start=0, step=1, limit=4
  $region2: #{tpu_custom_call.1} parent=0 // loop_pre_header
    _
  $region3: #{tpu_custom_call.1} parent=0 // loop_header
    %s9 = sphi 0, %s13
    %p10 = scmp.ge.s32.totalorder %s9, 4
    %s16 = sphi 0, %s28
    %s17 = sphi 0, %s24
    %s18 = sphi 0, %s16
    %s19 = sphi 0, %s17
    %s20 = sphi 0, %s18
    %s21 = sphi 0, %s19
    %s33 = sphi 0, %s35
    %s36 = sphi 0, %s33
    %s37 = sphi 0, %s36
    %s53 = sphi 0, %s37
    %s61 = sphi 0, %s63
    %s64 = sphi 0, %s61
    %s65 = sphi 0, %s64
    %s81 = sphi 0, %s65
    %s85 = sphi 0, %s85
    %s87 = sphi 0, %s85
    %s88 = sphi 0, %s87
    %s102 = sphi 0, %s88
    %s108 = sphi 0, %s110
    %s111 = sphi 0, %s108
    %s112 = sphi 0, %s111
    %s128 = sphi 0, %s112
  $region4: #{tpu_custom_call.1} parent=0 // loop_header_branch
    %12 = sbr.rel (%p10) target = $region8
  $region5: #{tpu_custom_call.1} parent=0 // loop_body
    %s14 = ssub.s32 %s9, 1
    %s15 = ssub.s32 %s9, 2
    %s22 = sadd.s32 1, %s17
    %p23 = scmp.ge.s32.totalorder %s22, 1
    %s24 = scalar_select %p23, 0, %s22
    %s25 = sadd.s32 1, %s16
    %s26 = scalar_select %p23, %s25, %s16
    %p27 = scmp.ge.s32.totalorder %s26, 2
    %s28 = scalar_select %p27, 0, %s26
    %s29 = ssub.s32 %s16, %s28
    %s30 = ssub.s32 %s17, %s24
    %s31 = sor.u32 %s29, %s30
    %p32 = scmp.eq.s32.totalorder %s31, 0
    %s34 = sadd.s32 %s33, 1
    %s35 = scalar_select %p32, %s33, %s34
    %p38 = pneg %p32
    %p39 = scmp.eq.s32.totalorder %s9, 1
    %p40 = por %p38, %p39
    %p41 = scmp.ne.s32.totalorder %s33, %s36
    %p42 = scmp.eq.s32.totalorder %s9, 0
    %p43 = por %p41, %p42
    %p44 = scmp.ne.s32.totalorder %s33, %s36
    %p45 = scmp.eq.s32.totalorder %s14, 1
    %p46 = por %p44, %p45
    %p47 = scmp.ne.s32.totalorder %s36, %s37
    %p48 = scmp.eq.s32.totalorder %s14, 0
    %p49 = por %p47, %p48
    %p50 = scmp.ne.s32.totalorder %s36, %s37
    %p51 = scmp.eq.s32.totalorder %s15, 1
    %p52 = por %p50, %p51
    %p54 = scmp.ne.s32.totalorder %s37, %s53
    %p55 = scmp.eq.s32.totalorder %s15, 0
    %p56 = por %p54, %p55
    %s57 = ssub.s32 %s16, %s28
    %s58 = ssub.s32 %s17, %s24
    %s59 = sor.u32 %s57, %s58
    %p60 = scmp.eq.s32.totalorder %s59, 0
    %s62 = sadd.s32 %s61, 1
    %s63 = scalar_select %p60, %s61, %s62
    %p66 = pneg %p60
    %p67 = scmp.eq.s32.totalorder %s9, 1
    %p68 = por %p66, %p67
    %p69 = scmp.ne.s32.totalorder %s61, %s64
    %p70 = scmp.eq.s32.totalorder %s9, 0
    %p71 = por %p69, %p70
    %p72 = scmp.ne.s32.totalorder %s61, %s64
    %p73 = scmp.eq.s32.totalorder %s14, 1
    %p74 = por %p72, %p73
    %p75 = scmp.ne.s32.totalorder %s64, %s65
    %p76 = scmp.eq.s32.totalorder %s14, 0
    %p77 = por %p75, %p76
    %p78 = scmp.ne.s32.totalorder %s64, %s65
    %p79 = scmp.eq.s32.totalorder %s15, 1
    %p80 = por %p78, %p79
    %p82 = scmp.ne.s32.totalorder %s65, %s81
    %p83 = scmp.eq.s32.totalorder %s15, 0
    %p84 = por %p82, %p83
    %s86 = sadd.s32 %s85, 1
    %p89 = scmp.eq.s32.totalorder %s9, 1
    %p90 = scmp.ne.s32.totalorder %s85, %s87
    %p91 = scmp.eq.s32.totalorder %s9, 0
    %p92 = por %p90, %p91
    %p93 = scmp.ne.s32.totalorder %s85, %s87
    %p94 = scmp.eq.s32.totalorder %s14, 1
    %p95 = por %p93, %p94
    %p96 = scmp.ne.s32.totalorder %s87, %s88
    %p97 = scmp.eq.s32.totalorder %s14, 0
    %p98 = por %p96, %p97
    %p99 = scmp.ne.s32.totalorder %s87, %s88
    %p100 = scmp.eq.s32.totalorder %s15, 1
    %p101 = por %p99, %p100
    %p103 = scmp.ne.s32.totalorder %s88, %s102
    %p104 = scmp.eq.s32.totalorder %s15, 0
    %p105 = por %p103, %p104
    %s106 = ssub.s32 %s16, %s28
    %p107 = scmp.eq.s32.totalorder %s106, 0
    %s109 = sadd.s32 %s108, 1
    %s110 = scalar_select %p107, %s108, %s109
    %p113 = pneg %p107
    %p114 = scmp.eq.s32.totalorder %s9, 1
    %p115 = por %p113, %p114
    %p116 = scmp.ne.s32.totalorder %s108, %s111
    %p117 = scmp.eq.s32.totalorder %s9, 0
    %p118 = por %p116, %p117
    %p119 = scmp.ne.s32.totalorder %s108, %s111
    %p120 = scmp.eq.s32.totalorder %s14, 1
    %p121 = por %p119, %p120
    %p122 = scmp.ne.s32.totalorder %s111, %s112
    %p123 = scmp.eq.s32.totalorder %s14, 0
    %p124 = por %p122, %p123
    %p125 = scmp.ne.s32.totalorder %s111, %s112
    %p126 = scmp.eq.s32.totalorder %s15, 1
    %p127 = por %p125, %p126
    %p129 = scmp.ne.s32.totalorder %s112, %s128
    %p130 = scmp.eq.s32.totalorder %s15, 0
    %p131 = por %p129, %p130
    %p132 = scmp.le.s32.totalorder 1, %s9
    %p133 = scmp.lt.s32.totalorder %s9, 3
    %p134 = pnand %p132, %p133
    %p135 = pneg %p134
    // Predicated region
    $region9: #{tpu_custom_call.1} parent=5 // pred_check
      _
    $region10: #{tpu_custom_call.1} parent=5 // pred_check_branch
      %137 = sbr.rel (%p134) target = $region12
    $region11: #{tpu_custom_call.1} parent=5 // pred_region
      %s138 = ssub.s32 %s9, 1
      // Predicated region
      $region13: #{tpu_custom_call.1} parent=11 // pred_check
        %p139 = pneg %p98
      $region14: #{tpu_custom_call.1} parent=11 // pred_check_branch
        %141 = sbr.rel (%p139) target = $region16
      $region15: #{tpu_custom_call.1} parent=11 // pred_region
        _
      $region16: #{tpu_custom_call.1} parent=11 // pred_fallthru
        _
    $region12: #{tpu_custom_call.1} parent=5 // pred_fallthru
      _
    %p142 = scmp.lt.s32.totalorder %s9, 2
    // Predicated region
    $region17: #{tpu_custom_call.1} parent=5 // pred_check
      %p143 = pneg %p142
    $region18: #{tpu_custom_call.1} parent=5 // pred_check_branch
      %145 = sbr.rel (%p143) target = $region20
    $region19: #{tpu_custom_call.1} parent=5 // pred_region
      // Predicated region
      $region21: #{tpu_custom_call.1} parent=19 // pred_check
        %p146 = pneg %p43
      $region22: #{tpu_custom_call.1} parent=19 // pred_check_branch
        %148 = sbr.rel (%p146) target = $region24
      $region23: #{tpu_custom_call.1} parent=19 // pred_region
        %p149 = scmp.lt.s32.totalorder %s16, 1
        %s150 = scalar_select %p149, %s16, 1
        %p151 = scmp.lt.s32.totalorder %s17, 0
        %s152 = scalar_select %p151, %s17, 0
        %s153 = sadd.s32 %s152, %s150
        %s154 = smul.addr %s153, 8
        %s155 = scalar_lea.vmem %s0, %s154
      $region24: #{tpu_custom_call.1} parent=19 // pred_fallthru
        _
      // Predicated region
      $region25: #{tpu_custom_call.1} parent=19 // pred_check
        %p156 = pneg %p71
      $region26: #{tpu_custom_call.1} parent=19 // pred_check_branch
        %158 = sbr.rel (%p156) target = $region28
      $region27: #{tpu_custom_call.1} parent=19 // pred_region
        %p159 = scmp.lt.s32.totalorder %s16, 1
        %s160 = scalar_select %p159, %s16, 1
        %p161 = scmp.lt.s32.totalorder %s17, 0
        %s162 = scalar_select %p161, %s17, 0
        %s163 = sadd.s32 %s162, %s160
        %s164 = smul.addr %s163, 8
        %s165 = scalar_lea.vmem %s1, %s164
      $region28: #{tpu_custom_call.1} parent=19 // pred_fallthru
        _
    $region20: #{tpu_custom_call.1} parent=5 // pred_fallthru
      _
    %p166 = scmp.le.s32.totalorder 1, %s9
    %p167 = scmp.lt.s32.totalorder %s9, 3
    %p168 = pnand %p166, %p167
    %p169 = pneg %p168
    // Predicated region
    $region29: #{tpu_custom_call.1} parent=5 // pred_check
      _
    $region30: #{tpu_custom_call.1} parent=5 // pred_check_branch
      %171 = sbr.rel (%p168) target = $region32
    $region31: #{tpu_custom_call.1} parent=5 // pred_region
      %s172 = ssub.s32 %s9, 1
      %p173 = scmp.lt.s32.totalorder %s18, 1
      %s174 = scalar_select %p173, %s18, 1
      %p175 = scmp.lt.s32.totalorder %s19, 0
      %s176 = scalar_select %p175, %s19, 0
      %s177 = sadd.s32 %s176, %s174
      %s178 = smul.addr %s177, 8
      %s179 = scalar_lea.vmem %s0, %s178
      %p180 = pneg %p49
      %p181 = pneg %p46
      %p182 = scmp.lt.s32.totalorder %s18, 1
      %s183 = scalar_select %p182, %s18, 1
      %p184 = scmp.lt.s32.totalorder %s19, 0
      %s185 = scalar_select %p184, %s19, 0
      %s186 = sadd.s32 %s185, %s183
      %s187 = smul.addr %s186, 8
      %s188 = scalar_lea.vmem %s1, %s187
      %p189 = pneg %p77
      %p190 = pneg %p74
      %p191 = pneg %p98
      %p192 = pneg %p95
      %p193 = pneg %p124
      %p194 = pneg %p121
      %p195 = scmp.lt.s32.totalorder %s18, 1
      %s196 = scalar_select %p195, %s18, 1
      %s197 = scalar_lea.vmem %s3, %s196
      %p198 = scmp.lt.s32.totalorder %s18, 1
      %s199 = scalar_select %p198, %s18, 1
      %p200 = scmp.lt.s32.totalorder %s19, 0
      %s201 = scalar_select %p200, %s19, 0
      %s202 = sadd.s32 %s201, %s199
      %s203 = smul.addr %s202, 8
      %s204 = scalar_lea.vmem %s0, %s203
      %p205 = scmp.lt.s32.totalorder %s18, 1
      %s206 = scalar_select %p205, %s18, 1
      %p207 = scmp.lt.s32.totalorder %s19, 0
      %s208 = scalar_select %p207, %s19, 0
      %s209 = sadd.s32 %s208, %s206
      %s210 = smul.addr %s209, 8
      %s211 = scalar_lea.vmem %s1, %s210
      %p212 = scmp.lt.s32.totalorder %s18, 1
      %s213 = scalar_select %p212, %s18, 1
      %s214 = scalar_lea.vmem %s3, %s213
      %p215 = scmp.eq.s32.totalorder %s19, 0
      // Predicated region
      $region33: #{tpu_custom_call.1} parent=31 // pred_check
        %p216 = pneg %p215
      $region34: #{tpu_custom_call.1} parent=31 // pred_check_branch
        %218 = sbr.rel (%p216) target = $region36
      $region35: #{tpu_custom_call.1} parent=31 // pred_region
        %vm219 = vcmask 0
        %220 = vst.msk [vmem:[#allocation2] sm:$0x1] %vm219, 0.0
        %221 = vst.msk [vmem:[#allocation3] sm:$0x1] %vm219, 0.0
      $region36: #{tpu_custom_call.1} parent=31 // pred_fallthru
        _
      %v222 = vld [vmem:[%s204] sm:$0xff]
      %v223 = vld [vmem:[%s211] sm:$0xff]
      %vm224 = vcmp.ne.s32.totalorder %v223, 4294967196
      %v225 = vlaneseq
      %v226 = vand.u32 %v225, 127
      %227 = vset.pattern.permute.xlu0 0
      %228 = vperm.xlu0 %227, %v223
      %v229 = vpop.permute.xlu0 %228
      %vm230 = vcmp.eq.s32.totalorder %v226, %v229
      %v231 = vsel %vm224, 1, 0
      %232 = vset.pattern.permute.xlu0 0
      %233 = vperm.xlu0 %232, %v231
      %v234 = vpop.permute.xlu0 %233
      %vm235 = vcmp.eq.s32.totalorder %v234, 1
      %vm236 = vmand %vm230, %vm235
      %v237 = vsel %vm236, %v222, 0.0
      %v238 = vld [vmem:[%s2] sm:$0x1]
      %v240 = vperm.slane %v238, 0
      %v242 = vsel %vm236, %v240, 0.0
      %v243 = vld [vmem:[#allocation2] sm:$0x1]
      %v244 = vmul.f32 %v242, %v237
      %vm245 = vcmask 261120
      %v246 = vsel %vm245, %v244, 0.0
      %247 = vadd.xlane.f32.xlu0 %v246
      %v248 = vpop.xlane.xlu0 %247
      %v249 = vrot.slane %v248, 4
      %v250 = vadd.f32 %v248, %v249
      %v251 = vrot.slane %v250, 2
      %v252 = vadd.f32 %v250, %v251
      %v253 = vrot.slane %v252, 1
      %v254 = vadd.f32 %v252, %v253
      %v255 = vadd.f32 %v243, %v254
      %vm256 = vcmask 0
      %257 = vst.msk [vmem:[#allocation2] sm:$0x1] %vm256, %v255
      %v258 = vld [vmem:[#allocation3] sm:$0x1]
      %v259 = vsel %vm245, %v242, 0.0
      %260 = vadd.xlane.f32.xlu0 %v259
      %v261 = vpop.xlane.xlu0 %260
      %v262 = vrot.slane %v261, 4
      %v263 = vadd.f32 %v261, %v262
      %v264 = vrot.slane %v263, 2
      %v265 = vadd.f32 %v263, %v264
      %v266 = vrot.slane %v265, 1
      %v267 = vadd.f32 %v265, %v266
      %v268 = vadd.f32 %v258, %v267
      %269 = vst.msk [vmem:[#allocation3] sm:$0x1] %vm256, %v268
      // Predicated region
      $region37: #{tpu_custom_call.1} parent=31 // pred_check
        %p270 = pneg %p215
      $region38: #{tpu_custom_call.1} parent=31 // pred_check_branch
        %272 = sbr.rel (%p270) target = $region40
      $region39: #{tpu_custom_call.1} parent=31 // pred_region
        %v273 = vld [vmem:[#allocation2] sm:$0x1]
        %v274 = vld [vmem:[#allocation3] sm:$0x1]
        %v275 = vrcp.pop %v274
        %v276 = vmul.f32 %v274, %v275
        %v277 = vsub.f32 1.0, %v276
        %v278 = vmul.f32 %v275, %v277
        %v279 = vadd.f32 %v275, %v278
        %vm280 = vweird.f32 %v274
        %vm281 = vweird.f32 %v275
        %vm282 = vmor %vm280, %vm281
        %v283 = vsel %vm282, %v275, %v279
        %v284 = vand.u32 2147483647, %v274
        %vm285 = vcmp.eq.f32.partialorder %v284, 8.507059e+37
        %v286 = vand.u32 %v274, 2147483648
        %v287 = vor.u32 1.1754944e-38, %v286
        %v288 = vsel %vm285, %v287, %v283
        %v289 = vmul.f32 %v273, %v288
        %v290 = vsub.f32 0.0, %v289
        %291 = vst.msk [vmem:[%s214] sm:$0x1] %vm256, %v290
      $region40: #{tpu_custom_call.1} parent=31 // pred_fallthru
        _
      %p292 = scmp.lt.s32.totalorder %s18, 1
      %s293 = scalar_select %p292, %s18, 1
      %s294 = scalar_lea.vmem %s3, %s293
      // Predicated region
      $region41: #{tpu_custom_call.1} parent=31 // pred_check
        %p295 = pneg %p121
      $region42: #{tpu_custom_call.1} parent=31 // pred_check_branch
        %297 = sbr.rel (%p295) target = $region44
      $region43: #{tpu_custom_call.1} parent=31 // pred_region
        _
      $region44: #{tpu_custom_call.1} parent=31 // pred_fallthru
        _
    $region32: #{tpu_custom_call.1} parent=5 // pred_fallthru
      _
    %p298 = scmp.le.s32.totalorder 2, %s9
    // Predicated region
    $region45: #{tpu_custom_call.1} parent=5 // pred_check
      %p299 = pneg %p298
    $region46: #{tpu_custom_call.1} parent=5 // pred_check_branch
      %301 = sbr.rel (%p299) target = $region48
    $region47: #{tpu_custom_call.1} parent=5 // pred_region
      %s302 = ssub.s32 %s9, 2
      // Predicated region
      $region49: #{tpu_custom_call.1} parent=47 // pred_check
        %p303 = pneg %p127
      $region50: #{tpu_custom_call.1} parent=47 // pred_check_branch
        %305 = sbr.rel (%p303) target = $region52
      $region51: #{tpu_custom_call.1} parent=47 // pred_region
        %p306 = scmp.lt.s32.totalorder %s20, 1
        %s307 = scalar_select %p306, %s20, 1
        %s308 = scalar_lea.vmem %s3, %s307
      $region52: #{tpu_custom_call.1} parent=47 // pred_fallthru
        _
    $region48: #{tpu_custom_call.1} parent=5 // pred_fallthru
      _
  $region6: #{tpu_custom_call.1} parent=0 // loop_footer
    %s13 = sadd.s32 1, %s9
  $region7: #{tpu_custom_call.1} parent=0 // loop_footer_branch
    %8 = sbr.rel target = $region3
  $region8: #{tpu_custom_call.1} parent=0 // loop_exit
    _

</llo_original>
